<compile_context>
chip_gen: v5e
topology: v5e:2x2
jax: 0.10.0
libtpu: 0.0.40
codegen_flags: <defaults>
</compile_context>

<pallas_src>
import functools
import math

import jax
import jax.numpy as jnp
from jax import lax
from jax.experimental import pallas as pl
from jax.experimental.pallas import tpu as pltpu


def attention_qkv_kernel(x_ref, w_ref, b_ref, out_ref, probs_ref, *, H):
    x = x_ref[...]                                        # (Bblk, S, D)

    # Single fused QKV projection.  LoRA deltas and 1/sqrt(H) are already
    # folded into w_ref / b_ref by the wrapper.
    qkv = lax.dot_general(
        x, w_ref[...],
        dimension_numbers=(((2,), (0,)), ((), ())),
        preferred_element_type=jnp.float32) + b_ref[...]  # (Bblk, S, 3H)

    q = qkv[..., 0 * H:1 * H]                             # pre-scaled by 1/sqrt(H)
    k = qkv[..., 1 * H:2 * H]
    v = qkv[..., 2 * H:3 * H]

    # sim[b, i, j] = q[b, i, :] . k[b, j, :]  — transpose absorbed into the
    # MXU contraction instead of materializing k^T via the XLU.
    sim = lax.dot_general(
        q, k,
        dimension_numbers=(((2,), (2,)), ((0,), (0,))),
        preferred_element_type=jnp.float32)               # (Bblk, S, S)

    # PyTorch uses F.softmax(..., dim=1) on the (B, S, S) tensor, i.e. it
    # normalizes over the *query* axis — reproduced exactly here (axis=1 of
    # the per-block (Bblk, S, S) tensor).
    m = jnp.max(sim, axis=1, keepdims=True)
    e = jnp.exp(sim - m)
    probs = e / jnp.sum(e, axis=1, keepdims=True)

    # TODO(synk): nn.Dropout on attention_probs omitted (identity in eval mode).
    probs_ref[...] = probs
    out_ref[...] = lax.dot_general(
        probs, v,
        dimension_numbers=(((2,), (1,)), ((0,), (0,))),
        preferred_element_type=jnp.float32)               # (Bblk, S, H)


def _pick_batch_block(B, S, target_rows=256):
    """Largest divisor of B whose (B_blk * S) projection row count <= target."""
    best = 1
    for cand in range(1, B + 1):
        if B % cand == 0 and cand * S <= max(S, target_rows):
            best = cand
    return best


def attention_forward(x, params, *, attention_head_size, lora_rank, lora_alpha,
                      batch_block=None):
    B, S, D = x.shape
    H = attention_head_size
    scaling = float(lora_alpha) / float(lora_rank)
    inv_sqrt_h = 1.0 / math.sqrt(H)

    # --- Algebraic folding (x-independent, done once outside the kernel) ---
    # query: (x @ Wq + bq) + (x @ (Aq @ Bq)) * s  ==  x @ (Wq + s*Aq@Bq) + bq
    # and the 1/sqrt(H) similarity scale is folded into the query projection.
    wq_eff = (params["wq"] + scaling * (params["lora_q_A"] @ params["lora_q_B"])) * inv_sqrt_h
    bq_eff = params["bq"] * inv_sqrt_h
    wv_eff = params["wv"] + scaling * (params["lora_v_A"] @ params["lora_v_B"])

    # Pack Q/K/V into one wide projection: (D, 3H) weight, (1, 3H) bias.
    w_qkv = jnp.concatenate([wq_eff, params["wk"], wv_eff], axis=1)
    b_qkv = jnp.concatenate([bq_eff, params["bk"], params["bv"]], axis=1)

    if batch_block is None:
        # Amortize per-step pipeline overhead by batching sequences per step.
        # NOTE (v7x): if B is large, keep the grid length a multiple of 2 so
        # both TensorCores get work; at these tiny demo sizes it is moot.
        batch_block = _pick_batch_block(B, S)
    assert B % batch_block == 0
    grid = (B // batch_block,)

    kern = functools.partial(attention_qkv_kernel, H=H)

    in_specs = [
        pl.BlockSpec((batch_block, S, D), lambda b: (b, 0, 0)),   # x block
        pl.BlockSpec((D, 3 * H), lambda b: (0, 0)),               # packed W
        pl.BlockSpec((1, 3 * H), lambda b: (0, 0)),               # packed b
    ]
    out_specs = (
        pl.BlockSpec((batch_block, S, H), lambda b: (b, 0, 0)),   # output
        pl.BlockSpec((batch_block, S, S), lambda b: (b, 0, 0)),   # attention_probs
    )
    out_shape = (
        jax.ShapeDtypeStruct((B, S, H), jnp.float32),
        jax.ShapeDtypeStruct((B, S, S), jnp.float32),
    )

    return pl.pallas_call(
        kern,
        grid=grid,
        in_specs=in_specs,
        out_specs=out_specs,
        out_shape=out_shape,
        compiler_params=pltpu.CompilerParams(
            dimension_semantics=("parallel",)),
    )(x, w_qkv, b_qkv)


def reference_forward(x, params, *, attention_head_size, lora_rank, lora_alpha):
    """Plain-JAX mirror of the PyTorch forward (eval mode, use_lora=True)."""
    scaling = float(lora_alpha) / float(lora_rank)
    q = x @ params["wq"] + params["bq"]
    k = x @ params["wk"] + params["bk"]
    v = x @ params["wv"] + params["bv"]
    query = q + (x @ (params["lora_q_A"] @ params["lora_q_B"])) * scaling
    value = v + (x @ (params["lora_v_A"] @ params["lora_v_B"])) * scaling
    sim = jnp.matmul(query, jnp.swapaxes(k, -1, -2)) / math.sqrt(attention_head_size)
    probs = jax.nn.softmax(sim, axis=1)   # dim=1, exactly as in the PyTorch code
    out = jnp.matmul(probs, value)
    return out, probs


if __name__ == "__main__":
    # Small shapes consistent with the module: x = (batch, seq, vector_dim).
    B, S, D, H = 2, 8, 32, 16
    LORA_RANK, LORA_ALPHA = 8, 16

    key = jax.random.PRNGKey(0)
    keys = jax.random.split(key, 12)

    x = jax.random.normal(keys[0], (B, S, D), dtype=jnp.float32)

    # Deterministic synthetic parameters (shapes from Attention.__init__).
    # PyTorch inits lora_B to zeros; use small random values so the LoRA path
    # actually contributes to the output being checked.
    params = {
        "wq": 0.1 * jax.random.normal(keys[1], (D, H), jnp.float32),
        "bq": 0.1 * jax.random.normal(keys[2], (1, H), jnp.float32),
        "wk": 0.1 * jax.random.normal(keys[3], (D, H), jnp.float32),
        "bk": 0.1 * jax.random.normal(keys[4], (1, H), jnp.float32),
        "wv": 0.1 * jax.random.normal(keys[5], (D, H), jnp.float32),
        "bv": 0.1 * jax.random.normal(keys[6], (1, H), jnp.float32),
        "lora_q_A": 0.1 * jax.random.normal(keys[7], (D, LORA_RANK), jnp.float32),
        "lora_q_B": 0.1 * jax.random.normal(keys[8], (LORA_RANK, H), jnp.float32),
        "lora_v_A": 0.1 * jax.random.normal(keys[9], (D, LORA_RANK), jnp.float32),
        "lora_v_B": 0.1 * jax.random.normal(keys[10], (LORA_RANK, H), jnp.float32),
    }

    out, probs = attention_forward(
        x, params,
        attention_head_size=H, lora_rank=LORA_RANK, lora_alpha=LORA_ALPHA)
    jax.block_until_ready((out, probs))

    ref_out, ref_probs = reference_forward(
        x, params,
        attention_head_size=H, lora_rank=LORA_RANK, lora_alpha=LORA_ALPHA)

    assert out.shape == (B, S, H) and probs.shape == (B, S, S)
    assert jnp.allclose(out, ref_out, atol=1e-5, rtol=1e-4)
    assert jnp.allclose(probs, ref_probs, atol=1e-5, rtol=1e-4)

    print("KERNEL_OK")
</pallas_src>

<mosaic_0001>
module attributes {stable_mosaic.version = 11 : i64} {
  func.func @attention_qkv_kernel(%arg0: i32, %arg1: memref<2x8x32xf32, #tpu.memory_space<vmem>>, %arg2: memref<32x48xf32, #tpu.memory_space<vmem>>, %arg3: memref<1x48xf32, #tpu.memory_space<vmem>>, %arg4: memref<2x8x16xf32, #tpu.memory_space<vmem>>, %arg5: memref<2x8x8xf32, #tpu.memory_space<vmem>>) attributes {dimension_semantics = [#tpu.dimension_semantics<parallel>], iteration_bounds = array<i64: 1>, scalar_prefetch = 0 : i64, scratch_operands = 0 : i64, tpu.core_type = #tpu.core_type<tc>, window_params = [{transform_indices = @transform_0, window_bounds = array<i64: 2, 8, 32>}, {pipeline_mode = #tpu.pipeline_mode<synchronous>, transform_indices = @transform_1, window_bounds = array<i64: 32, 48>}, {pipeline_mode = #tpu.pipeline_mode<synchronous>, transform_indices = @transform_2, window_bounds = array<i64: 1, 48>}, {transform_indices = @transform_3, window_bounds = array<i64: 2, 8, 16>}, {transform_indices = @transform_4, window_bounds = array<i64: 2, 8, 8>}]} {
    %c0 = arith.constant 0 : index
    %c0_0 = arith.constant 0 : index
    %c0_1 = arith.constant 0 : index
    %0 = vector.load %arg1[%c0, %c0_0, %c0_1] : memref<2x8x32xf32, #tpu.memory_space<vmem>>, vector<2x8x32xf32>
    %c0_2 = arith.constant 0 : index
    %c0_3 = arith.constant 0 : index
    %1 = vector.load %arg2[%c0_2, %c0_3] : memref<32x48xf32, #tpu.memory_space<vmem>>, vector<32x48xf32>
    %cst = arith.constant dense<0.000000e+00> : vector<2x8x48xf32>
    %2 = tpu.matmul %0, %1, %cst {dimension_numbers = #tpu.dot_dimension_numbers<[2], [0], [0, 1], [1], [0, 0, 0, 1, 1, 1], [], []>} : vector<2x8x32xf32>, vector<32x48xf32>, vector<2x8x48xf32> -> vector<2x8x48xf32>
    %c0_4 = arith.constant 0 : index
    %c0_5 = arith.constant 0 : index
    %3 = vector.load %arg3[%c0_4, %c0_5] : memref<1x48xf32, #tpu.memory_space<vmem>>, vector<1x48xf32>
    %4 = vector.shape_cast %3 : vector<1x48xf32> to vector<1x1x48xf32>
    %5 = vector.broadcast %4 : vector<1x1x48xf32> to vector<2x8x48xf32>
    %6 = arith.addf %2, %5 : vector<2x8x48xf32>
    %7 = vector.extract_strided_slice %6 {offsets = [0, 0, 0], sizes = [2, 8, 16], strides = [1, 1, 1]} : vector<2x8x48xf32> to vector<2x8x16xf32>
    %8 = vector.extract_strided_slice %6 {offsets = [0, 0, 16], sizes = [2, 8, 16], strides = [1, 1, 1]} : vector<2x8x48xf32> to vector<2x8x16xf32>
    %9 = vector.extract_strided_slice %6 {offsets = [0, 0, 32], sizes = [2, 8, 16], strides = [1, 1, 1]} : vector<2x8x48xf32> to vector<2x8x16xf32>
    %cst_6 = arith.constant dense<0.000000e+00> : vector<2x8x8xf32>
    %10 = tpu.matmul %7, %8, %cst_6 {dimension_numbers = #tpu.dot_dimension_numbers<[2], [2], [1], [1], [0, 0, 0, 1, 1, 1], [0], [0]>} : vector<2x8x16xf32>, vector<2x8x16xf32>, vector<2x8x8xf32> -> vector<2x8x8xf32>
    %cst_7 = arith.constant dense<0xFF800000> : vector<2x8xf32>
    %11 = vector.multi_reduction <maximumf>, %10, %cst_7 [1] : vector<2x8x8xf32> to vector<2x8xf32>
    %12 = vector.shape_cast %11 : vector<2x8xf32> to vector<2x1x8xf32>
    %13 = vector.broadcast %12 : vector<2x1x8xf32> to vector<2x8x8xf32>
    %14 = arith.subf %10, %13 : vector<2x8x8xf32>
    %15 = math.exp %14 : vector<2x8x8xf32>
    %cst_8 = arith.constant dense<0.000000e+00> : vector<2x8xf32>
    %16 = vector.multi_reduction <add>, %15, %cst_8 [1] : vector<2x8x8xf32> to vector<2x8xf32>
    %17 = vector.shape_cast %16 : vector<2x8xf32> to vector<2x1x8xf32>
    %18 = vector.broadcast %17 : vector<2x1x8xf32> to vector<2x8x8xf32>
    %19 = arith.divf %15, %18 : vector<2x8x8xf32>
    %c0_9 = arith.constant 0 : index
    %c0_10 = arith.constant 0 : index
    %c0_11 = arith.constant 0 : index
    %20 = vector.load %arg5[%c0_9, %c0_10, %c0_11] : memref<2x8x8xf32, #tpu.memory_space<vmem>>, vector<2x8x8xf32>
    tpu.vector_store %arg5[%c0_9, %c0_10, %c0_11], %19 {strides = array<i32>} : memref<2x8x8xf32, #tpu.memory_space<vmem>>, vector<2x8x8xf32>,
    %cst_12 = arith.constant dense<0.000000e+00> : vector<2x8x16xf32>
    %21 = tpu.matmul %19, %9, %cst_12 {dimension_numbers = #tpu.dot_dimension_numbers<[2], [1], [1], [2], [0, 0, 0, 1, 1, 2], [0], [0]>} : vector<2x8x8xf32>, vector<2x8x16xf32>, vector<2x8x16xf32> -> vector<2x8x16xf32>
    %c0_13 = arith.constant 0 : index
    %c0_14 = arith.constant 0 : index
    %c0_15 = arith.constant 0 : index
    %22 = vector.load %arg4[%c0_13, %c0_14, %c0_15] : memref<2x8x16xf32, #tpu.memory_space<vmem>>, vector<2x8x16xf32>
    tpu.vector_store %arg4[%c0_13, %c0_14, %c0_15], %21 {strides = array<i32>} : memref<2x8x16xf32, #tpu.memory_space<vmem>>, vector<2x8x16xf32>,
    return
  }
  func.func @transform_0(%arg0: i32) -> (i32, i32, i32) {
    %c0_i32 = arith.constant 0 : i32
    %c0_i32_0 = arith.constant 0 : i32
    %c0_i32_1 = arith.constant 0 : i32
    return %arg0, %c0_i32, %c0_i32_0 : i32, i32, i32
  }
  func.func @transform_1(%arg0: i32) -> (i32, i32) {
    %c0_i32 = arith.constant 0 : i32
    %c0_i32_0 = arith.constant 0 : i32
    %c0_i32_1 = arith.constant 0 : i32
    return %c0_i32, %c0_i32_0 : i32, i32
  }
  func.func @transform_2(%arg0: i32) -> (i32, i32) {
    %c0_i32 = arith.constant 0 : i32
    %c0_i32_0 = arith.constant 0 : i32
    %c0_i32_1 = arith.constant 0 : i32
    return %c0_i32, %c0_i32_0 : i32, i32
  }
  func.func @transform_3(%arg0: i32) -> (i32, i32, i32) {
    %c0_i32 = arith.constant 0 : i32
    %c0_i32_0 = arith.constant 0 : i32
    %c0_i32_1 = arith.constant 0 : i32
    return %arg0, %c0_i32, %c0_i32_0 : i32, i32, i32
  }
  func.func @transform_4(%arg0: i32) -> (i32, i32, i32) {
    %c0_i32 = arith.constant 0 : i32
    %c0_i32_0 = arith.constant 0 : i32
    %c0_i32_1 = arith.constant 0 : i32
    return %arg0, %c0_i32, %c0_i32_0 : i32, i32, i32
  }
}

</mosaic_0001>

<llo_original>
// kernel: tpu_custom_call.1
$region0: #{tpu_custom_call.1}
  #allocation0 [shape = 'u32[]', space=smem, size = 0x4, offset = 0x4, fixed_abs, tag = 'smem constant byte address 0x4 - core index']
  #allocation1 [shape = 'u32[72,128]{1,0:T(1,128)}', space=vmem, size = 0x9000, scoped, tag = 'internal scratch']
  %s0 = inlined_call_operand.hbm [shape: f32[2,8,32], index: 0, kind: input, shape index: {}]
  %s1 = inlined_call_operand.hbm [shape: f32[32,48], index: 1, kind: input, shape index: {}]
  %s2 = inlined_call_operand.vmem [shape: f32[1,48], index: 2, kind: input, shape index: {}]
  %s3 = inlined_call_operand.hbm [shape: f32[2,8,16], index: 3, kind: output, shape index: {0}]
  %s4 = inlined_call_operand.hbm [shape: f32[2,8,8], index: 4, kind: output, shape index: {1}]
  %5 = xla_tuple %s3, %s4
  %s6 = sld [smem:[#allocation0]]
  $region38: #{tpu_custom_call.1} parent=0
    _
  %s8 = ssub.s32 1, %s6
  %s9 = scalar_select 0, %s8, %s6
  $region1: #{tpu_custom_call.1} parent=0
    #allocation2 [shape = 'u8[8192]{0}', space=vmem, size = 0x2000, scoped, tag = 'input window, operand 0, single buffered']
    #allocation3 [shape = 's32[1]{0}', space=sflag, size = 0x4, scoped, tag = 'scoped memory for tpu_custom_call.1']
    #allocation4 [shape = 's32[1]{0}', space=sflag, size = 0x4, scoped, tag = 'scoped memory for tpu_custom_call.1']
    #allocation5 [shape = 'u8[16384]{0}', space=vmem, size = 0x4000, scoped, tag = 'input window, operand 1, single buffered']
    #allocation6 [shape = 's32[1]{0}', space=sflag, size = 0x4, scoped, tag = 'scoped memory for tpu_custom_call.1']
    #allocation7 [shape = 'u8[8192]{0}', space=vmem, size = 0x2000, scoped, tag = 'output window, operand 0, single buffered']
    #allocation8 [shape = 'u8[8192]{0}', space=vmem, size = 0x2000, scoped, tag = 'output window, operand 1, single buffered']
    #allocation9 [shape = 's32[1]{0}', space=sflag, size = 0x4, scoped, tag = 'scoped memory for tpu_custom_call.1']
    %10 = vsyncpa [#allocation3], 0
    %11 = vsyncpa [#allocation6], 0
    %12 = vsyncpa [#allocation4], 0
    %13 = vsyncpa [#allocation9], 0
    // Predicated region
    $region2: #{tpu_custom_call.1} parent=1 // pred_check
      _
    $region3: #{tpu_custom_call.1} parent=1 // pred_check_branch
      %15 = sbr.rel (0) target = $region5
    $region4: #{tpu_custom_call.1} parent=1 // pred_region
      %17 = vsyncadd [#allocation3], 0
      %s18 = sshll.u32 %s0, 4
      %s19 = int_to_ptr.hbm [resolvable:$true] %s18
      %s20 = sshll.u32 [#allocation2], 4
      %s21 = int_to_ptr.vmem [resolvable:$true] %s20
      %26 = dma.hbm_to_vmem [thread:$0]  %s19, 256, %s21, [#allocation3], 128, 128, 8
    $region5: #{tpu_custom_call.1} parent=1 // pred_fallthru
      _
    // Predicated region
    $region6: #{tpu_custom_call.1} parent=1 // pred_check
      _
    $region7: #{tpu_custom_call.1} parent=1 // pred_check_branch
      %28 = sbr.rel (0) target = $region9
    $region8: #{tpu_custom_call.1} parent=1 // pred_region
      %30 = vsyncadd [#allocation6], 0
      %s31 = sshll.u32 %s1, 4
      %s32 = int_to_ptr.hbm [resolvable:$true] %s31
      %s33 = sshll.u32 [#allocation5], 4
      %s34 = int_to_ptr.vmem [resolvable:$true] %s33
      %39 = dma.hbm_to_vmem [thread:$0]  %s32, 512, %s34, [#allocation6], 128, 128, 8
    $region9: #{tpu_custom_call.1} parent=1 // pred_fallthru
      _
    // Predicated region
    $region10: #{tpu_custom_call.1} parent=1 // pred_check
      _
    $region11: #{tpu_custom_call.1} parent=1 // pred_check_branch
      %41 = sbr.rel (0) target = $region13
    $region12: #{tpu_custom_call.1} parent=1 // pred_region
      _
    $region13: #{tpu_custom_call.1} parent=1 // pred_fallthru
      _
    // Predicated region
    $region14: #{tpu_custom_call.1} parent=1 // pred_check
      _
    $region15: #{tpu_custom_call.1} parent=1 // pred_check_branch
      %43 = sbr.rel (0) target = $region17
    $region16: #{tpu_custom_call.1} parent=1 // pred_region
      %45 = dma.done [#allocation3], 256
    $region17: #{tpu_custom_call.1} parent=1 // pred_fallthru
      _
    // Predicated region
    $region18: #{tpu_custom_call.1} parent=1 // pred_check
      _
    $region19: #{tpu_custom_call.1} parent=1 // pred_check_branch
      %47 = sbr.rel (0) target = $region21
    $region20: #{tpu_custom_call.1} parent=1 // pred_region
      %49 = dma.done [#allocation6], 512
    $region21: #{tpu_custom_call.1} parent=1 // pred_fallthru
      _
    %v50 = vld [vmem:[#allocation2] sm:$0xff]
    %v51 = vld [vmem:[#allocation2 + $0x8] sm:$0xff]
    %v52 = vld [vmem:[#allocation5] sm:$0xff]
    %v53 = vld [vmem:[#allocation5 + $0x8] sm:$0xff]
    %v54 = vld [vmem:[#allocation5 + $0x10] sm:$0xff]
    %v55 = vld [vmem:[#allocation5 + $0x18] sm:$0xff]
    %v56 = vld [vmem:[%s2] sm:$0x1]
    %v58 = vperm.slane %v56, 0
    %vm60 = vcmask 261120
    %v62 = vsel %vm60, %v50, 0
    %v65 = vsel %vm60, %v51, 0
    %67 = vmatpush.msra.mxu0 0.0
    %68 = vmatpush.msra.mxu0 0.0
    %69 = vmatpush.msra.mxu0 0.0
    %70 = vmatpush.msra.mxu0 0.0
    %71 = vmatpush.msra.mxu0 0.0
    %72 = vmatpush.msra.mxu0 0.0
    %73 = vmatpush.msra.mxu0 0.0
    %74 = vmatpush.msra.mxu0 0.0
    %75 = vmatpush.msra.mxu0 0.0
    %76 = vmatpush.msra.mxu0 0.0
    %77 = vmatpush.msra.mxu0 0.0
    %78 = vmatpush.msra.mxu0 0.0
    %79 = vmatpush.msra.mxu0 %v55
    %80 = vmatpush.msra.mxu0 %v54
    %81 = vmatpush.msra.mxu0 %v53
    %82 = vmatpush.msra.mxu0 %v52
    %83 = vmatmul.f32.gmra.mxu0 %v62
    %v84 = vpop.f32.mrf.mxu0
    %v85 = vadd.f32 %v58, %v84
    %86 = vmatmul.f32.gmra.mxu0 %v65
    %v87 = vpop.f32.mrf.mxu0
    %v88 = vadd.f32 %v58, %v87
    %89 = vdwg.mxu0
    %91 = vrot.lane.b32.xlu0 %v85, 112
    %v92 = vpop.permute.xlu0 %91
    %vm93 = vcmask 130048
    %v94 = vsel %vm93, %v85, 0
    %v96 = vsel %vm93, %v92, 0
    %98 = vmatpush.xpose.msra.mxu0 0.0
    %99 = vmatpush.xpose.msra.mxu0 0.0
    %100 = vmatpush.xpose.msra.mxu0 0.0
    %101 = vmatpush.xpose.msra.mxu0 0.0
    %102 = vmatpush.xpose.msra.mxu0 0.0
    %103 = vmatpush.xpose.msra.mxu0 0.0
    %104 = vmatpush.xpose.msra.mxu0 0.0
    %105 = vmatpush.xpose.msra.mxu0 0.0
    %106 = vmatpush.xpose.msra.mxu0 0.0
    %107 = vmatpush.xpose.msra.mxu0 0.0
    %108 = vmatpush.xpose.msra.mxu0 0.0
    %109 = vmatpush.xpose.msra.mxu0 0.0
    %110 = vmatpush.xpose.msra.mxu0 0.0
    %111 = vmatpush.xpose.msra.mxu0 0.0
    %112 = vmatpush.xpose.msra.mxu0 0.0
    %113 = vmatpush.xpose.msra.mxu0 %v96
    %114 = vmatmul.f32.gmra.mxu0 %v94
    %v115 = vpop.f32.mrf.mxu0
    %v116 = vadd.f32 0.0, %v115
    %117 = vdwg.mxu0
    %119 = vrot.lane.b32.xlu0 %v88, 112
    %v120 = vpop.permute.xlu0 %119
    %v121 = vsel %vm93, %v88, 0
    %v123 = vsel %vm93, %v120, 0
    %125 = vmatpush.xpose.msra.mxu0 0.0
    %126 = vmatpush.xpose.msra.mxu0 0.0
    %127 = vmatpush.xpose.msra.mxu0 0.0
    %128 = vmatpush.xpose.msra.mxu0 0.0
    %129 = vmatpush.xpose.msra.mxu0 0.0
    %130 = vmatpush.xpose.msra.mxu0 0.0
    %131 = vmatpush.xpose.msra.mxu0 0.0
    %132 = vmatpush.xpose.msra.mxu0 0.0
    %133 = vmatpush.xpose.msra.mxu0 0.0
    %134 = vmatpush.xpose.msra.mxu0 0.0
    %135 = vmatpush.xpose.msra.mxu0 0.0
    %136 = vmatpush.xpose.msra.mxu0 0.0
    %137 = vmatpush.xpose.msra.mxu0 0.0
    %138 = vmatpush.xpose.msra.mxu0 0.0
    %139 = vmatpush.xpose.msra.mxu0 0.0
    %140 = vmatpush.xpose.msra.mxu0 %v123
    %141 = vmatmul.f32.gmra.mxu0 %v121
    %v142 = vpop.f32.mrf.mxu0
    %v143 = vadd.f32 0.0, %v142
    %144 = vdwg.mxu0
    %vm145 = vcmask 64512
    %v146 = vsel %vm145, %v116, -inf
    %v147 = vrot.slane %v146, 4
    %v148 = vmax.f32 %v146, %v147
    %v149 = vrot.slane %v148, 2
    %v150 = vmax.f32 %v148, %v149
    %v151 = vrot.slane %v150, 1
    %v152 = vmax.f32 %v150, %v151
    %v153 = vsel %vm145, %v143, -inf
    %v154 = vrot.slane %v153, 4
    %v155 = vmax.f32 %v153, %v154
    %v156 = vrot.slane %v155, 2
    %v157 = vmax.f32 %v155, %v156
    %v158 = vrot.slane %v157, 1
    %v159 = vmax.f32 %v157, %v158
    %v160 = vsub.f32 %v116, %v152
    %v161 = vsub.f32 %v143, %v159
    %v162 = vmul.f32 %v160, 1.442695
    %v163 = vpow.pop %v162
    %v164 = vmul.f32 %v161, 1.442695
    %v165 = vpow.pop %v164
    %v166 = vsel %vm145, %v163, 0.0
    %v167 = vrot.slane %v166, 4
    %v168 = vadd.f32 %v166, %v167
    %v169 = vrot.slane %v168, 2
    %v170 = vadd.f32 %v168, %v169
    %v171 = vrot.slane %v170, 1
    %v172 = vadd.f32 %v170, %v171
    %v173 = vsel %vm145, %v165, 0.0
    %v174 = vrot.slane %v173, 4
    %v175 = vadd.f32 %v173, %v174
    %v176 = vrot.slane %v175, 2
    %v177 = vadd.f32 %v175, %v176
    %v178 = vrot.slane %v177, 1
    %v179 = vadd.f32 %v177, %v178
    %v180 = vrcp.pop %v172
    %v181 = vmul.f32 %v172, %v180
    %v182 = vsub.f32 1.0, %v181
    %v183 = vmul.f32 %v180, %v182
    %v184 = vadd.f32 %v180, %v183
    %vm185 = vweird.f32 %v172
    %vm186 = vweird.f32 %v180
    %vm187 = vmor %vm185, %vm186
    %v188 = vsel %vm187, %v180, %v184
    %v189 = vand.u32 2147483647, %v172
    %vm190 = vcmp.eq.f32.partialorder %v189, 8.507059e+37
    %v191 = vand.u32 %v172, 2147483648
    %v192 = vor.u32 1.1754944e-38, %v191
    %v193 = vsel %vm190, %v192, %v188
    %v194 = vmul.f32 %v163, %v193
    %v195 = vrcp.pop %v179
    %v196 = vmul.f32 %v179, %v195
    %v197 = vsub.f32 1.0, %v196
    %v198 = vmul.f32 %v195, %v197
    %v199 = vadd.f32 %v195, %v198
    %vm200 = vweird.f32 %v179
    %vm201 = vweird.f32 %v195
    %vm202 = vmor %vm200, %vm201
    %v203 = vsel %vm202, %v195, %v199
    %v204 = vand.u32 2147483647, %v179
    %vm205 = vcmp.eq.f32.partialorder %v204, 8.507059e+37
    %v206 = vand.u32 %v179, 2147483648
    %v207 = vor.u32 1.1754944e-38, %v206
    %v208 = vsel %vm205, %v207, %v203
    %v209 = vmul.f32 %v165, %v208
    %210 = vst.msk [vmem:[#allocation8] sm:$0xff] %vm145, %v194
    %211 = vst.msk [vmem:[#allocation8 + $0x8] sm:$0xff] %vm145, %v209
    %212 = vrot.lane.b32.xlu0 %v85, 96
    %v213 = vpop.permute.xlu0 %212
    %v216 = vsel %vm145, %v194, 0
    %218 = vmatpush.msra.mxu0 0.0
    %219 = vmatpush.msra.mxu0 0.0
    %220 = vmatpush.msra.mxu0 0.0
    %221 = vmatpush.msra.mxu0 0.0
    %222 = vmatpush.msra.mxu0 0.0
    %223 = vmatpush.msra.mxu0 0.0
    %224 = vmatpush.msra.mxu0 0.0
    %225 = vmatpush.msra.mxu0 0.0
    %226 = vmatpush.msra.mxu0 0.0
    %227 = vmatpush.msra.mxu0 0.0
    %228 = vmatpush.msra.mxu0 0.0
    %229 = vmatpush.msra.mxu0 0.0
    %230 = vmatpush.msra.mxu0 0.0
    %231 = vmatpush.msra.mxu0 0.0
    %232 = vmatpush.msra.mxu0 0.0
    %233 = vmatpush.msra.mxu0 %v213
    %234 = vmatmul.f32.gmra.mxu0 %v216
    %v235 = vpop.f32.mrf.mxu0
    %v236 = vadd.f32 0.0, %v235
    %237 = vdwg.mxu0
    %238 = vrot.lane.b32.xlu0 %v88, 96
    %v239 = vpop.permute.xlu0 %238
    %v242 = vsel %vm145, %v209, 0
    %244 = vmatpush.msra.mxu0 0.0
    %245 = vmatpush.msra.mxu0 0.0
    %246 = vmatpush.msra.mxu0 0.0
    %247 = vmatpush.msra.mxu0 0.0
    %248 = vmatpush.msra.mxu0 0.0
    %249 = vmatpush.msra.mxu0 0.0
    %250 = vmatpush.msra.mxu0 0.0
    %251 = vmatpush.msra.mxu0 0.0
    %252 = vmatpush.msra.mxu0 0.0
    %253 = vmatpush.msra.mxu0 0.0
    %254 = vmatpush.msra.mxu0 0.0
    %255 = vmatpush.msra.mxu0 0.0
    %256 = vmatpush.msra.mxu0 0.0
    %257 = vmatpush.msra.mxu0 0.0
    %258 = vmatpush.msra.mxu0 0.0
    %259 = vmatpush.msra.mxu0 %v239
    %260 = vmatmul.f32.gmra.mxu0 %v242
    %v261 = vpop.f32.mrf.mxu0
    %v262 = vadd.f32 0.0, %v261
    %263 = vdwg.mxu0
    %264 = vst.msk [vmem:[#allocation7] sm:$0xff] %vm93, %v236
    %265 = vst.msk [vmem:[#allocation7 + $0x8] sm:$0xff] %vm93, %v262
    // Predicated region
    $region22: #{tpu_custom_call.1} parent=1 // pred_check
      _
    $region23: #{tpu_custom_call.1} parent=1 // pred_check_branch
      %267 = sbr.rel (0) target = $region25
    $region24: #{tpu_custom_call.1} parent=1 // pred_region
      %269 = vsyncadd [#allocation4], 0
      %s270 = sshll.u32 [#allocation7], 4
      %s271 = int_to_ptr.vmem [resolvable:$true] %s270
      %s272 = sshll.u32 %s3, 4
      %s273 = int_to_ptr.hbm [resolvable:$true] %s272
      %278 = dma.vmem_to_hbm [thread:$0]  %s271, 256, %s273, [#allocation4], 128, 128, 8
    $region25: #{tpu_custom_call.1} parent=1 // pred_fallthru
      _
    // Predicated region
    $region26: #{tpu_custom_call.1} parent=1 // pred_check
      _
    $region27: #{tpu_custom_call.1} parent=1 // pred_check_branch
      %280 = sbr.rel (0) target = $region29
    $region28: #{tpu_custom_call.1} parent=1 // pred_region
      %282 = vsyncadd [#allocation9], 0
      %s283 = sshll.u32 [#allocation8], 4
      %s284 = int_to_ptr.vmem [resolvable:$true] %s283
      %s285 = sshll.u32 %s4, 4
      %s286 = int_to_ptr.hbm [resolvable:$true] %s285
      %291 = dma.vmem_to_hbm [thread:$0]  %s284, 256, %s286, [#allocation9], 128, 128, 8
    $region29: #{tpu_custom_call.1} parent=1 // pred_fallthru
      _
    // Predicated region
    $region30: #{tpu_custom_call.1} parent=1 // pred_check
      _
    $region31: #{tpu_custom_call.1} parent=1 // pred_check_branch
      %293 = sbr.rel (0) target = $region33
    $region32: #{tpu_custom_call.1} parent=1 // pred_region
      %295 = dma.done [#allocation4], 256
    $region33: #{tpu_custom_call.1} parent=1 // pred_fallthru
      _
    // Predicated region
    $region34: #{tpu_custom_call.1} parent=1 // pred_check
      _
    $region35: #{tpu_custom_call.1} parent=1 // pred_check_branch
      %297 = sbr.rel (0) target = $region37
    $region36: #{tpu_custom_call.1} parent=1 // pred_region
      %299 = dma.done [#allocation9], 256
    $region37: #{tpu_custom_call.1} parent=1 // pred_fallthru
      _
    %300 = vsyncpa [#allocation3], 1
    %301 = vsyncpa [#allocation6], 1
    %302 = vsyncpa [#allocation4], 1
    %303 = vsyncpa [#allocation9], 1

</llo_original>
